<compile_context>
chip_gen: v7x
topology: tpu7x:2x2x1
jax: 0.10.0
libtpu: 0.0.40
codegen_flags: <defaults>
</compile_context>

<pallas_src>
import functools

import jax
import jax.numpy as jnp
from jax.experimental import pallas as pl
from jax.experimental.pallas import tpu as pltpu


# ---------------------------------------------------------------------------
# Path 1 (default): zero-copy identity via input/output buffer aliasing.
# ---------------------------------------------------------------------------
def _identity_alias_kernel(x_hbm_ref, o_hbm_ref):
    # The output buffer is aliased to the input buffer, so the data is already
    # in place: nothing to load, nothing to store, nothing to compute.
    del x_hbm_ref, o_hbm_ref


def identity_map(x: jax.Array) -> jax.Array:
    """IdentityMap.forward(x) -> x. Zero data movement (output aliases input)."""
    return pl.pallas_call(
        _identity_alias_kernel,
        out_shape=jax.ShapeDtypeStruct(x.shape, x.dtype),
        # Keep both operands in HBM; no auto-DMA, no VMEM tiles.
        in_specs=[pl.BlockSpec(memory_space=pl.ANY)],
        out_specs=pl.BlockSpec(memory_space=pl.ANY),
        # Output buffer == input buffer: the identity costs nothing.
        input_output_aliases={0: 0},
        cost_estimate=pl.CostEstimate(flops=0, transcendentals=0,
                                      bytes_accessed=0),
    )(x)


# ---------------------------------------------------------------------------
# Path 2 (optional): materialized copy as concurrent whole-array HBM -> HBM
# DMAs.  Use this only when the caller needs a distinct output buffer.
# ---------------------------------------------------------------------------
def _identity_dma_copy_kernel(x_hbm_ref, o_hbm_ref, sem, *, n_streams, chunk):
    # Issue all DMAs first (start), then wait on all of them, so multiple DMA
    # engines can be in flight simultaneously.  No VMEM staging at all.
    copies = []
    for i in range(n_streams):
        sl = pl.ds(i * chunk, chunk)
        copies.append(
            pltpu.make_async_copy(x_hbm_ref.at[sl], o_hbm_ref.at[sl], sem.at[i])
        )
    for cp in copies:
        cp.start()
    for cp in copies:
        cp.wait()


def identity_map_copy(x: jax.Array, max_streams: int = 4) -> jax.Array:
    """IdentityMap.forward(x) -> x, materializing a fresh output buffer."""
    orig_shape = x.shape
    x2 = x.reshape(1, 1) if x.ndim == 0 else x  # DMA wants a >= 1-D ref

    # Split the leading dim into up to `max_streams` equal chunks so several
    # DMA engines can drive HBM bandwidth; fall back to a single DMA.
    lead = x2.shape[0]
    n_streams = 1
    for cand in range(min(max_streams, lead), 0, -1):
        if lead % cand == 0:
            n_streams = cand
            break
    chunk = lead // n_streams

    nbytes = x2.size * x2.dtype.itemsize
    kernel = functools.partial(
        _identity_dma_copy_kernel, n_streams=n_streams, chunk=chunk
    )
    out = pl.pallas_call(
        kernel,
        out_shape=jax.ShapeDtypeStruct(x2.shape, x2.dtype),
        in_specs=[pl.BlockSpec(memory_space=pl.ANY)],
        out_specs=pl.BlockSpec(memory_space=pl.ANY),
        scratch_shapes=[pltpu.SemaphoreType.DMA((n_streams,))],
        # Pure memory traffic: one full read + one full write.
        cost_estimate=pl.CostEstimate(flops=0, transcendentals=0,
                                      bytes_accessed=2 * nbytes),
    )(x2)
    return out.reshape(orig_shape)


def identity_map_config():
    # Mirrors the PyTorch `config` property (no compute involved).
    return {"mm_projector_type": "identity"}


if __name__ == "__main__":
    key = jax.random.PRNGKey(0)
    # Projector-style input: batch=2, seq=8, hidden=32.
    x = jax.random.normal(key, (2, 8, 32), dtype=jnp.float32)

    # Default zero-copy (aliased) path.
    y = identity_map(x)
    jax.block_until_ready(y)
    assert y.shape == x.shape, (y.shape, x.shape)
    assert y.dtype == x.dtype, (y.dtype, x.dtype)
    assert bool(jnp.all(y == x)), "identity (alias path) mismatch"

    # Materialized-copy path (concurrent HBM->HBM DMAs).
    y2 = identity_map_copy(x)
    jax.block_until_ready(y2)
    assert y2.shape == x.shape, (y2.shape, x.shape)
    assert y2.dtype == x.dtype, (y2.dtype, x.dtype)
    assert bool(jnp.all(y2 == x)), "identity (copy path) mismatch"

    # Also exercise a non-divisible leading dim (falls back to 1 DMA) and bf16.
    x3 = jax.random.normal(key, (3, 8, 32), dtype=jnp.bfloat16)
    y3 = identity_map_copy(x3)
    jax.block_until_ready(y3)
    assert y3.shape == x3.shape and y3.dtype == x3.dtype
    assert bool(jnp.all(y3 == x3)), "identity (copy path, odd lead) mismatch"

    print("KERNEL_OK")
</pallas_src>

<mosaic_0001>
module attributes {stable_mosaic.version = 11 : i64} {
  func.func @_identity_alias_kernel(%arg0: memref<2x8x32xf32, #tpu.memory_space<any>>, %arg1: memref<2x8x32xf32, #tpu.memory_space<any>>) attributes {dimension_semantics = [], scalar_prefetch = 0 : i64, scratch_operands = 0 : i64, tpu.core_type = #tpu.core_type<tc>} {
    return
  }
}

</mosaic_0001>

<llo_original>
// kernel: tpu_custom_call.1
$region0: #{tpu_custom_call.1}
  #allocation0 [shape = 'u32[]', space=smem, size = 0x4, offset = 0x4, fixed_abs, tag = 'smem constant byte address 0x4 - core index']
  #allocation1 [shape = 'u32[144,128]{1,0:T(1,128)}', space=vmem, size = 0x12000, scoped, tag = 'internal scratch']
  %s0 = inlined_call_operand.hbm [shape: f32[2,8,32], index: 0, kind: input, shape index: {}, may-alias: {0,1}]
  %s1 = inlined_call_operand.hbm [shape: f32[2,8,32], index: 1, kind: output, shape index: {}, may-alias: {0,1}]
  %s2 = sld [smem:[#allocation0]]
  $region2: #{tpu_custom_call.1} parent=0
    _
  %s4 = ssub.s32 1, %s2
  %s5 = scalar_select 0, %s4, %s2

</llo_original>
